<compile_context>
chip_gen: v6e
topology: v6e:2x2x1
jax: 0.10.0
libtpu: 0.0.40
codegen_flags: <defaults>
</compile_context>

<pallas_src>
import jax
import jax.numpy as jnp
from jax.experimental import pallas as pl
from jax.experimental.pallas import tpu as pltpu


def encoder_kernel(tc_ref, var_ref, mask_ref,
                   w1_tc_ref, w1_var_ref, b1_ref, w2_ref, b2_ref,
                   features_ref, reduced_ref):
    L, B, N, E = var_ref.shape
    H = w1_tc_ref.shape[1]
    F = w2_ref.shape[1]

    # L-invariant half of the first layer: (B*N, E) @ (E, H)  (computed once, not per l)
    tc = tc_ref[...].astype(jnp.float32).reshape(B * N, E)
    tc_proj = jnp.dot(tc, w1_tc_ref[...], preferred_element_type=jnp.float32)

    # Variable half for all L steps in one tall matmul: (L*B*N, E) @ (E, H)
    var = var_ref[...].astype(jnp.float32).reshape(L * B * N, E)
    var_proj = jnp.dot(var, w1_var_ref[...], preferred_element_type=jnp.float32)

    # cat([tc, var], -1) @ w1 == tc @ w1[:E] + var @ w1[E:]
    h = var_proj.reshape(L, B * N, H) + tc_proj[None, :, :] + b1_ref[...]
    h = jnp.maximum(h, 0.0)                                       # ReLU

    # Fold the mean over N before the second matmul: mean_N(h @ w2 + b2) == mean_N(h) @ w2 + b2
    hbar = jnp.mean(h.reshape(L * B, N, H), axis=1)               # (L*B, H)
    y = jnp.dot(hbar, w2_ref[...], preferred_element_type=jnp.float32) + b2_ref[...]

    vfeat = y.reshape(L, B, F)                                    # (L, B, F)
    feat = vfeat * mask_ref[...].astype(jnp.float32)[:, :, None]  # apply sequence mask
    features_ref[...] = feat                                      # features.data
    reduced_ref[...] = jnp.sum(feat, axis=0)                      # features.data.sum(dim=0)


def encoder_forward(test_case_tensor, variables_data, variables_mask,
                    test_case_feature, w1, b1, w2, b2):
    """Returns ((features_data, features_mask), concat([in_feature_mean, reduced], axis=1))."""
    L, B, N, E = variables_data.shape
    H = w1.shape[1]
    F = w2.shape[1]

    # in_feature.mean(dim=1): loop-independent, trivially fused by XLA outside the kernel.
    infeat_mean = jnp.mean(test_case_feature.astype(jnp.float32), axis=1)   # (B, C)

    if L == 0:
        # Empty-variables branch of the PyTorch module (static shape case).
        feats = jnp.zeros((0, B, F), jnp.float32)
        reduced = jnp.zeros((B, F), jnp.float32)
        return (feats, variables_mask), jnp.concatenate([infeat_mean, reduced], axis=1)

    # Split w1 along the concatenation axis so no (L,B,N,2E) array is ever materialized.
    w1_tc = w1[:E]     # rows that multiply the (broadcast) test_case half
    w1_var = w1[E:]    # rows that multiply the variables half

    mask_f = variables_mask.astype(jnp.float32)                   # (L, B)

    grid_spec = pltpu.PrefetchScalarGridSpec(
        num_scalar_prefetch=0,
        grid=(1,),   # whole problem fits comfortably in VMEM at these sizes
        in_specs=[
            pl.BlockSpec((B, N, E), lambda i: (0, 0, 0)),          # test_case_tensor
            pl.BlockSpec((L, B, N, E), lambda i: (0, 0, 0, 0)),    # variables_data
            pl.BlockSpec((L, B), lambda i: (0, 0)),                # mask
            pl.BlockSpec((E, H), lambda i: (0, 0)),                # w1_tc
            pl.BlockSpec((E, H), lambda i: (0, 0)),                # w1_var
            pl.BlockSpec((1, H), lambda i: (0, 0)),                # b1
            pl.BlockSpec((H, F), lambda i: (0, 0)),                # w2
            pl.BlockSpec((1, F), lambda i: (0, 0)),                # b2
        ],
        out_specs=[
            pl.BlockSpec((L, B, F), lambda i: (0, 0, 0)),          # features.data
            pl.BlockSpec((B, F), lambda i: (0, 0)),                # reduced_feature
        ],
    )

    features, reduced = pl.pallas_call(
        encoder_kernel,
        grid_spec=grid_spec,
        out_shape=(
            jax.ShapeDtypeStruct((L, B, F), jnp.float32),
            jax.ShapeDtypeStruct((B, F), jnp.float32),
        ),
        compiler_params=pltpu.CompilerParams(
            dimension_semantics=("arbitrary",),
            vmem_limit_bytes=32 * 1024 * 1024,
        ),
    )(test_case_tensor, variables_data, mask_f, w1_tc, w1_var, b1, w2, b2)

    out = jnp.concatenate([infeat_mean, reduced], axis=1)          # (B, C + F)  -- glue
    return (features, variables_mask), out


def reference(test_case_tensor, variables_data, variables_mask,
              test_case_feature, w1, b1, w2, b2):
    L, B, N, E = variables_data.shape
    proc = jnp.broadcast_to(test_case_tensor[None], variables_data.shape)
    f = jnp.concatenate([proc, variables_data], axis=3)
    x = f.reshape(L * B * N, 2 * E)
    h = jnp.maximum(x @ w1 + b1, 0.0)
    y = h @ w2 + b2
    vfeat = y.reshape(L, B, N, -1).mean(axis=2)
    infeat = test_case_feature.mean(axis=1)
    feats = vfeat * variables_mask.astype(jnp.float32)[:, :, None]
    reduced = feats.sum(axis=0)
    return feats, jnp.concatenate([infeat, reduced], axis=1)


if __name__ == "__main__":
    L, B, N, E, H, C = 3, 2, 4, 16, 32, 16
    F = C  # module output feature size matches C (as implied by the empty-case branch)

    key = jax.random.PRNGKey(0)
    ks = jax.random.split(key, 7)
    test_case_tensor = jax.random.normal(ks[0], (B, N, E), jnp.float32)
    variables_data = jax.random.normal(ks[1], (L, B, N, E), jnp.float32)
    test_case_feature = jax.random.normal(ks[2], (B, N, C), jnp.float32)
    lengths = jnp.array([3, 2], dtype=jnp.int32)                       # valid variables per batch
    variables_mask = (jnp.arange(L)[:, None] < lengths[None, :]).astype(jnp.float32)  # (L, B)

    # deterministic synthetic parameters for the inner MLP module
    w1 = 0.1 * jax.random.normal(ks[3], (2 * E, H), jnp.float32)
    b1 = 0.1 * jax.random.normal(ks[4], (1, H), jnp.float32)
    w2 = 0.1 * jax.random.normal(ks[5], (H, F), jnp.float32)
    b2 = 0.1 * jax.random.normal(ks[6], (1, F), jnp.float32)

    (feat_data, feat_mask), out = encoder_forward(
        test_case_tensor, variables_data, variables_mask, test_case_feature,
        w1, b1, w2, b2)
    jax.block_until_ready((feat_data, feat_mask, out))

    ref_feats, ref_out = reference(
        test_case_tensor, variables_data, variables_mask, test_case_feature,
        w1, b1, w2, b2)

    assert feat_data.shape == (L, B, F) and out.shape == (B, C + F)
    assert jnp.allclose(feat_data, ref_feats, atol=1e-4, rtol=1e-4)
    assert jnp.allclose(out, ref_out, atol=1e-4, rtol=1e-4)
    print("KERNEL_OK")
</pallas_src>

<mosaic_0001>
module attributes {stable_mosaic.version = 11 : i64} {
  func.func @encoder_kernel(%arg0: i32, %arg1: memref<2x4x16xf32, #tpu.memory_space<vmem>>, %arg2: memref<3x2x4x16xf32, #tpu.memory_space<vmem>>, %arg3: memref<3x2xf32, #tpu.memory_space<vmem>>, %arg4: memref<16x32xf32, #tpu.memory_space<vmem>>, %arg5: memref<16x32xf32, #tpu.memory_space<vmem>>, %arg6: memref<1x32xf32, #tpu.memory_space<vmem>>, %arg7: memref<32x16xf32, #tpu.memory_space<vmem>>, %arg8: memref<1x16xf32, #tpu.memory_space<vmem>>, %arg9: memref<3x2x16xf32, #tpu.memory_space<vmem>>, %arg10: memref<2x16xf32, #tpu.memory_space<vmem>>) attributes {dimension_semantics = [#tpu.dimension_semantics<arbitrary>], iteration_bounds = array<i64: 1>, scalar_prefetch = 0 : i64, scratch_operands = 0 : i64, tpu.core_type = #tpu.core_type<tc>, window_params = [{pipeline_mode = #tpu.pipeline_mode<synchronous>, transform_indices = @transform_0, window_bounds = array<i64: 2, 4, 16>}, {pipeline_mode = #tpu.pipeline_mode<synchronous>, transform_indices = @transform_1, window_bounds = array<i64: 3, 2, 4, 16>}, {pipeline_mode = #tpu.pipeline_mode<synchronous>, transform_indices = @transform_2, window_bounds = array<i64: 3, 2>}, {pipeline_mode = #tpu.pipeline_mode<synchronous>, transform_indices = @transform_3, window_bounds = array<i64: 16, 32>}, {pipeline_mode = #tpu.pipeline_mode<synchronous>, transform_indices = @transform_4, window_bounds = array<i64: 16, 32>}, {pipeline_mode = #tpu.pipeline_mode<synchronous>, transform_indices = @transform_5, window_bounds = array<i64: 1, 32>}, {pipeline_mode = #tpu.pipeline_mode<synchronous>, transform_indices = @transform_6, window_bounds = array<i64: 32, 16>}, {pipeline_mode = #tpu.pipeline_mode<synchronous>, transform_indices = @transform_7, window_bounds = array<i64: 1, 16>}, {pipeline_mode = #tpu.pipeline_mode<synchronous>, transform_indices = @transform_8, window_bounds = array<i64: 3, 2, 16>}, {pipeline_mode = #tpu.pipeline_mode<synchronous>, transform_indices = @transform_9, window_bounds = array<i64: 2, 16>}]} {
    %c0 = arith.constant 0 : index
    %c0_0 = arith.constant 0 : index
    %c0_1 = arith.constant 0 : index
    %0 = vector.load %arg1[%c0, %c0_0, %c0_1] : memref<2x4x16xf32, #tpu.memory_space<vmem>>, vector<2x4x16xf32>
    %1 = vector.shape_cast %0 : vector<2x4x16xf32> to vector<8x16xf32>
    %c0_2 = arith.constant 0 : index
    %c0_3 = arith.constant 0 : index
    %2 = vector.load %arg4[%c0_2, %c0_3] : memref<16x32xf32, #tpu.memory_space<vmem>>, vector<16x32xf32>
    %cst = arith.constant dense<0.000000e+00> : vector<8x32xf32>
    %3 = tpu.matmul %1, %2, %cst {dimension_numbers = #tpu.dot_dimension_numbers<[1], [0], [0], [1], [0, 0, 1, 1], [], []>} : vector<8x16xf32>, vector<16x32xf32>, vector<8x32xf32> -> vector<8x32xf32>
    %c0_4 = arith.constant 0 : index
    %c0_5 = arith.constant 0 : index
    %c0_6 = arith.constant 0 : index
    %c0_7 = arith.constant 0 : index
    %4 = vector.load %arg2[%c0_4, %c0_5, %c0_6, %c0_7] : memref<3x2x4x16xf32, #tpu.memory_space<vmem>>, vector<3x2x4x16xf32>
    %5 = vector.shape_cast %4 : vector<3x2x4x16xf32> to vector<24x16xf32>
    %c0_8 = arith.constant 0 : index
    %c0_9 = arith.constant 0 : index
    %6 = vector.load %arg5[%c0_8, %c0_9] : memref<16x32xf32, #tpu.memory_space<vmem>>, vector<16x32xf32>
    %cst_10 = arith.constant dense<0.000000e+00> : vector<24x32xf32>
    %7 = tpu.matmul %5, %6, %cst_10 {dimension_numbers = #tpu.dot_dimension_numbers<[1], [0], [0], [1], [0, 0, 1, 1], [], []>} : vector<24x16xf32>, vector<16x32xf32>, vector<24x32xf32> -> vector<24x32xf32>
    %8 = vector.shape_cast %7 : vector<24x32xf32> to vector<3x8x32xf32>
    %9 = vector.shape_cast %3 : vector<8x32xf32> to vector<1x8x32xf32>
    %10 = vector.broadcast %9 : vector<1x8x32xf32> to vector<3x8x32xf32>
    %11 = arith.addf %8, %10 : vector<3x8x32xf32>
    %c0_11 = arith.constant 0 : index
    %c0_12 = arith.constant 0 : index
    %12 = vector.load %arg6[%c0_11, %c0_12] : memref<1x32xf32, #tpu.memory_space<vmem>>, vector<1x32xf32>
    %13 = vector.shape_cast %12 : vector<1x32xf32> to vector<1x1x32xf32>
    %14 = vector.broadcast %13 : vector<1x1x32xf32> to vector<3x8x32xf32>
    %15 = arith.addf %11, %14 : vector<3x8x32xf32>
    %cst_13 = arith.constant 0.000000e+00 : f32
    %16 = vector.broadcast %cst_13 : f32 to vector<3x8x32xf32>
    %17 = arith.maximumf %15, %16 : vector<3x8x32xf32>
    %18 = vector.shape_cast %17 : vector<3x8x32xf32> to vector<6x4x32xf32>
    %cst_14 = arith.constant dense<0.000000e+00> : vector<6x32xf32>
    %19 = vector.multi_reduction <add>, %18, %cst_14 [1] : vector<6x4x32xf32> to vector<6x32xf32>
    %cst_15 = arith.constant 4.000000e+00 : f32
    %20 = vector.broadcast %cst_15 : f32 to vector<6x32xf32>
    %21 = arith.divf %19, %20 : vector<6x32xf32>
    %c0_16 = arith.constant 0 : index
    %c0_17 = arith.constant 0 : index
    %22 = vector.load %arg7[%c0_16, %c0_17] : memref<32x16xf32, #tpu.memory_space<vmem>>, vector<32x16xf32>
    %cst_18 = arith.constant dense<0.000000e+00> : vector<6x16xf32>
    %23 = tpu.matmul %21, %22, %cst_18 {dimension_numbers = #tpu.dot_dimension_numbers<[1], [0], [0], [1], [0, 0, 1, 1], [], []>} : vector<6x32xf32>, vector<32x16xf32>, vector<6x16xf32> -> vector<6x16xf32>
    %c0_19 = arith.constant 0 : index
    %c0_20 = arith.constant 0 : index
    %24 = vector.load %arg8[%c0_19, %c0_20] : memref<1x16xf32, #tpu.memory_space<vmem>>, vector<1x16xf32>
    %25 = vector.broadcast %24 : vector<1x16xf32> to vector<6x16xf32>
    %26 = arith.addf %23, %25 : vector<6x16xf32>
    %27 = vector.shape_cast %26 : vector<6x16xf32> to vector<3x2x16xf32>
    %c0_21 = arith.constant 0 : index
    %c0_22 = arith.constant 0 : index
    %28 = vector.load %arg3[%c0_21, %c0_22] : memref<3x2xf32, #tpu.memory_space<vmem>>, vector<3x2xf32>
    %29 = vector.shape_cast %28 : vector<3x2xf32> to vector<3x2x1xf32>
    %30 = vector.broadcast %29 : vector<3x2x1xf32> to vector<3x2x16xf32>
    %31 = arith.mulf %27, %30 : vector<3x2x16xf32>
    %c0_23 = arith.constant 0 : index
    %c0_24 = arith.constant 0 : index
    %c0_25 = arith.constant 0 : index
    %32 = vector.load %arg9[%c0_23, %c0_24, %c0_25] : memref<3x2x16xf32, #tpu.memory_space<vmem>>, vector<3x2x16xf32>
    tpu.vector_store %arg9[%c0_23, %c0_24, %c0_25], %31 {strides = array<i32>} : memref<3x2x16xf32, #tpu.memory_space<vmem>>, vector<3x2x16xf32>,
    %cst_26 = arith.constant dense<0.000000e+00> : vector<2x16xf32>
    %33 = vector.multi_reduction <add>, %31, %cst_26 [0] : vector<3x2x16xf32> to vector<2x16xf32>
    %c0_27 = arith.constant 0 : index
    %c0_28 = arith.constant 0 : index
    %34 = vector.load %arg10[%c0_27, %c0_28] : memref<2x16xf32, #tpu.memory_space<vmem>>, vector<2x16xf32>
    tpu.vector_store %arg10[%c0_27, %c0_28], %33 {strides = array<i32>} : memref<2x16xf32, #tpu.memory_space<vmem>>, vector<2x16xf32>,
    return
  }
  func.func @transform_0(%arg0: i32) -> (i32, i32, i32) {
    %c0_i32 = arith.constant 0 : i32
    %c0_i32_0 = arith.constant 0 : i32
    %c0_i32_1 = arith.constant 0 : i32
    %c0_i32_2 = arith.constant 0 : i32
    return %c0_i32, %c0_i32_0, %c0_i32_1 : i32, i32, i32
  }
  func.func @transform_1(%arg0: i32) -> (i32, i32, i32, i32) {
    %c0_i32 = arith.constant 0 : i32
    %c0_i32_0 = arith.constant 0 : i32
    %c0_i32_1 = arith.constant 0 : i32
    %c0_i32_2 = arith.constant 0 : i32
    %c0_i32_3 = arith.constant 0 : i32
    return %c0_i32, %c0_i32_0, %c0_i32_1, %c0_i32_2 : i32, i32, i32, i32
  }
  func.func @transform_2(%arg0: i32) -> (i32, i32) {
    %c0_i32 = arith.constant 0 : i32
    %c0_i32_0 = arith.constant 0 : i32
    %c0_i32_1 = arith.constant 0 : i32
    return %c0_i32, %c0_i32_0 : i32, i32
  }
  func.func @transform_3(%arg0: i32) -> (i32, i32) {
    %c0_i32 = arith.constant 0 : i32
    %c0_i32_0 = arith.constant 0 : i32
    %c0_i32_1 = arith.constant 0 : i32
    return %c0_i32, %c0_i32_0 : i32, i32
  }
  func.func @transform_4(%arg0: i32) -> (i32, i32) {
    %c0_i32 = arith.constant 0 : i32
    %c0_i32_0 = arith.constant 0 : i32
    %c0_i32_1 = arith.constant 0 : i32
    return %c0_i32, %c0_i32_0 : i32, i32
  }
  func.func @transform_5(%arg0: i32) -> (i32, i32) {
    %c0_i32 = arith.constant 0 : i32
    %c0_i32_0 = arith.constant 0 : i32
    %c0_i32_1 = arith.constant 0 : i32
    return %c0_i32, %c0_i32_0 : i32, i32
  }
  func.func @transform_6(%arg0: i32) -> (i32, i32) {
    %c0_i32 = arith.constant 0 : i32
    %c0_i32_0 = arith.constant 0 : i32
    %c0_i32_1 = arith.constant 0 : i32
    return %c0_i32, %c0_i32_0 : i32, i32
  }
  func.func @transform_7(%arg0: i32) -> (i32, i32) {
    %c0_i32 = arith.constant 0 : i32
    %c0_i32_0 = arith.constant 0 : i32
    %c0_i32_1 = arith.constant 0 : i32
    return %c0_i32, %c0_i32_0 : i32, i32
  }
  func.func @transform_8(%arg0: i32) -> (i32, i32, i32) {
    %c0_i32 = arith.constant 0 : i32
    %c0_i32_0 = arith.constant 0 : i32
    %c0_i32_1 = arith.constant 0 : i32
    %c0_i32_2 = arith.constant 0 : i32
    return %c0_i32, %c0_i32_0, %c0_i32_1 : i32, i32, i32
  }
  func.func @transform_9(%arg0: i32) -> (i32, i32) {
    %c0_i32 = arith.constant 0 : i32
    %c0_i32_0 = arith.constant 0 : i32
    %c0_i32_1 = arith.constant 0 : i32
    return %c0_i32, %c0_i32_0 : i32, i32
  }
}

</mosaic_0001>

<llo_original>
// kernel: tpu_custom_call.1
$region0: #{tpu_custom_call.1}
  #allocation0 [shape = 'u32[]', space=smem, size = 0x4, offset = 0x4, fixed_abs, tag = 'smem constant byte address 0x4 - core index']
  #allocation1 [shape = 'u32[144,128]{1,0:T(1,128)}', space=vmem, size = 0x12000, scoped, tag = 'internal scratch']
  %s0 = inlined_call_operand.hbm [shape: f32[2,4,16], index: 0, kind: input, shape index: {}]
  %s1 = inlined_call_operand.vmem [shape: f32[3,2,4,16], index: 1, kind: input, shape index: {}]
  %s2 = inlined_call_operand.vmem [shape: f32[3,2], index: 2, kind: input, shape index: {}]
  %s3 = inlined_call_operand.vmem [shape: f32[16,32], index: 3, kind: input, shape index: {}]
  %s4 = inlined_call_operand.vmem [shape: f32[16,32], index: 4, kind: input, shape index: {}]
  %s5 = inlined_call_operand.vmem [shape: f32[1,32], index: 5, kind: input, shape index: {}]
  %s6 = inlined_call_operand.vmem [shape: f32[32,16], index: 6, kind: input, shape index: {}]
  %s7 = inlined_call_operand.vmem [shape: f32[1,16], index: 7, kind: input, shape index: {}]
  %s8 = inlined_call_operand.hbm [shape: f32[3,2,16], index: 8, kind: output, shape index: {0}]
  %s9 = inlined_call_operand.hbm [shape: f32[2,16], index: 9, kind: output, shape index: {1}]
  %10 = xla_tuple %s8, %s9
  %s11 = sld [smem:[#allocation0]]
  $region54: #{tpu_custom_call.1} parent=0
    _
  %s13 = ssub.s32 1, %s11
  %s14 = scalar_select 0, %s13, %s11
  $region1: #{tpu_custom_call.1} parent=0
    #allocation2 [shape = 'u8[4096]{0}', space=vmem, size = 0x1000, scoped, tag = 'input window, operand 0, single buffered']
    #allocation3 [shape = 's32[1]{0}', space=sflag, size = 0x4, scoped, tag = 'scoped memory for tpu_custom_call.1']
    #allocation4 [shape = 's32[1]{0}', space=sflag, size = 0x4, scoped, tag = 'scoped memory for tpu_custom_call.1']
    #allocation5 [shape = 'u8[3072]{0}', space=vmem, size = 0xc00, scoped, tag = 'output window, operand 0, single buffered']
    #allocation6 [shape = 'u8[1024]{0}', space=vmem, size = 0x400, scoped, tag = 'output window, operand 1, single buffered']
    #allocation7 [shape = 's32[1]{0}', space=sflag, size = 0x4, scoped, tag = 'scoped memory for tpu_custom_call.1']
    %15 = vsyncpa [#allocation3], 0
    %16 = vsyncpa [#allocation4], 0
    %17 = vsyncpa [#allocation7], 0
    // Predicated region
    $region2: #{tpu_custom_call.1} parent=1 // pred_check
      _
    $region3: #{tpu_custom_call.1} parent=1 // pred_check_branch
      %19 = sbr.rel (0) target = $region5
    $region4: #{tpu_custom_call.1} parent=1 // pred_region
      %s21 = ssub.s32 128, 128
      %22 = vsyncadd [#allocation3], %s21
      %s23 = sshll.u32 [#allocation2], 4
      %s24 = int_to_ptr.vmem [resolvable:$true] %s23
      %29 = dma.hbm_to_vmem [thread:$0]  %s0, 128, %s24, [#allocation3], 64, 64, 4
    $region5: #{tpu_custom_call.1} parent=1 // pred_fallthru
      _
    // Predicated region
    $region6: #{tpu_custom_call.1} parent=1 // pred_check
      _
    $region7: #{tpu_custom_call.1} parent=1 // pred_check_branch
      %31 = sbr.rel (0) target = $region9
    $region8: #{tpu_custom_call.1} parent=1 // pred_region
      _
    $region9: #{tpu_custom_call.1} parent=1 // pred_fallthru
      _
    // Predicated region
    $region10: #{tpu_custom_call.1} parent=1 // pred_check
      _
    $region11: #{tpu_custom_call.1} parent=1 // pred_check_branch
      %33 = sbr.rel (0) target = $region13
    $region12: #{tpu_custom_call.1} parent=1 // pred_region
      _
    $region13: #{tpu_custom_call.1} parent=1 // pred_fallthru
      _
    // Predicated region
    $region14: #{tpu_custom_call.1} parent=1 // pred_check
      _
    $region15: #{tpu_custom_call.1} parent=1 // pred_check_branch
      %35 = sbr.rel (0) target = $region17
    $region16: #{tpu_custom_call.1} parent=1 // pred_region
      _
    $region17: #{tpu_custom_call.1} parent=1 // pred_fallthru
      _
    // Predicated region
    $region18: #{tpu_custom_call.1} parent=1 // pred_check
      _
    $region19: #{tpu_custom_call.1} parent=1 // pred_check_branch
      %37 = sbr.rel (0) target = $region21
    $region20: #{tpu_custom_call.1} parent=1 // pred_region
      _
    $region21: #{tpu_custom_call.1} parent=1 // pred_fallthru
      _
    // Predicated region
    $region22: #{tpu_custom_call.1} parent=1 // pred_check
      _
    $region23: #{tpu_custom_call.1} parent=1 // pred_check_branch
      %39 = sbr.rel (0) target = $region25
    $region24: #{tpu_custom_call.1} parent=1 // pred_region
      _
    $region25: #{tpu_custom_call.1} parent=1 // pred_fallthru
      _
    // Predicated region
    $region26: #{tpu_custom_call.1} parent=1 // pred_check
      _
    $region27: #{tpu_custom_call.1} parent=1 // pred_check_branch
      %41 = sbr.rel (0) target = $region29
    $region28: #{tpu_custom_call.1} parent=1 // pred_region
      _
    $region29: #{tpu_custom_call.1} parent=1 // pred_fallthru
      _
    // Predicated region
    $region30: #{tpu_custom_call.1} parent=1 // pred_check
      _
    $region31: #{tpu_custom_call.1} parent=1 // pred_check_branch
      %43 = sbr.rel (0) target = $region33
    $region32: #{tpu_custom_call.1} parent=1 // pred_region
      _
    $region33: #{tpu_custom_call.1} parent=1 // pred_fallthru
      _
    // Predicated region
    $region34: #{tpu_custom_call.1} parent=1 // pred_check
      _
    $region35: #{tpu_custom_call.1} parent=1 // pred_check_branch
      %45 = sbr.rel (0) target = $region37
    $region36: #{tpu_custom_call.1} parent=1 // pred_region
      %46 = dma.done [#allocation3], 128
    $region37: #{tpu_custom_call.1} parent=1 // pred_fallthru
      _
    %v47 = vld [vmem:[#allocation2] sm:$0xf]
    %v48 = vld [vmem:[#allocation2 + $0x4] sm:$0xf]
    %v49 = vld [vmem:[%s3] sm:$0xff]
    %v50 = vld [vmem:[%s3 + $0x8] sm:$0xff]
    %v53 = vcombine.low %v47, %v48
    %vm54 = vcmask 130048
    %v55 = vsel %vm54, %v53, 0
    %57 = vmatprep.subr.mxu0 0.0
    %58 = vmatpush1.msra.mxu0 0.0
    %59 = vmatprep.subr.mxu0 0.0
    %60 = vmatpush1.msra.mxu0 0.0
    %61 = vmatprep.subr.mxu0 0.0
    %62 = vmatpush1.msra.mxu0 0.0
    %63 = vmatprep.subr.mxu0 0.0
    %64 = vmatpush1.msra.mxu0 0.0
    %65 = vmatprep.subr.mxu0 0.0
    %66 = vmatpush1.msra.mxu0 0.0
    %67 = vmatprep.subr.mxu0 0.0
    %68 = vmatpush1.msra.mxu0 0.0
    %69 = vmatprep.subr.mxu0 0.0
    %70 = vmatpush1.msra.mxu0 0.0
    %71 = vmatprep.subr.mxu0 0.0
    %72 = vmatpush1.msra.mxu0 0.0
    %73 = vmatprep.subr.mxu0 0.0
    %74 = vmatpush1.msra.mxu0 0.0
    %75 = vmatprep.subr.mxu0 0.0
    %76 = vmatpush1.msra.mxu0 0.0
    %77 = vmatprep.subr.mxu0 0.0
    %78 = vmatpush1.msra.mxu0 0.0
    %79 = vmatprep.subr.mxu0 0.0
    %80 = vmatpush1.msra.mxu0 0.0
    %81 = vmatprep.subr.mxu0 0.0
    %82 = vmatpush1.msra.mxu0 0.0
    %83 = vmatprep.subr.mxu0 0.0
    %84 = vmatpush1.msra.mxu0 0.0
    %85 = vmatprep.subr.mxu0 0.0
    %86 = vmatpush1.msra.mxu0 %v50
    %87 = vmatprep.subr.mxu0 0.0
    %88 = vmatpush1.msra.mxu0 %v49
    %89 = vmatprep.subr.mxu0 0.0
    %90 = vmatpush2.msra.mxu0 0.0
    %91 = vmatprep.subr.mxu0 0.0
    %92 = vmatpush2.msra.mxu0 0.0
    %93 = vmatprep.subr.mxu0 0.0
    %94 = vmatpush2.msra.mxu0 0.0
    %95 = vmatprep.subr.mxu0 0.0
    %96 = vmatpush2.msra.mxu0 0.0
    %97 = vmatprep.subr.mxu0 0.0
    %98 = vmatpush2.msra.mxu0 0.0
    %99 = vmatprep.subr.mxu0 0.0
    %100 = vmatpush2.msra.mxu0 0.0
    %101 = vmatprep.subr.mxu0 0.0
    %102 = vmatpush2.msra.mxu0 0.0
    %103 = vmatprep.subr.mxu0 0.0
    %104 = vmatpush2.msra.mxu0 0.0
    %105 = vmatprep.subr.mxu0 0.0
    %106 = vmatpush2.msra.mxu0 0.0
    %107 = vmatprep.subr.mxu0 0.0
    %108 = vmatpush2.msra.mxu0 0.0
    %109 = vmatprep.subr.mxu0 0.0
    %110 = vmatpush2.msra.mxu0 0.0
    %111 = vmatprep.subr.mxu0 0.0
    %112 = vmatpush2.msra.mxu0 0.0
    %113 = vmatprep.subr.mxu0 0.0
    %114 = vmatpush2.msra.mxu0 0.0
    %115 = vmatprep.subr.mxu0 0.0
    %116 = vmatpush2.msra.mxu0 0.0
    %117 = vmatprep.subr.mxu0 0.0
    %118 = vmatpush2.msra.mxu0 0.0
    %119 = vmatprep.subr.mxu0 0.0
    %120 = vmatpush2.msra.mxu0 0.0
    %121 = vmatprep.mubr.f32.mxu0 0.0
    %122 = vmatmul.mubr.f32.gmra.mxu0 %v55
    %v123 = vpop.f32.mrf.mxu0
    %v124 = vadd.f32 0.0, %v123
    %v125 = vpop.f32.mrf.mxu0
    %126 = vdwg.mxu0
    %v127 = vld [vmem:[%s1] sm:$0xf]
    %v128 = vld [vmem:[%s1 + $0x4] sm:$0xf]
    %v129 = vld [vmem:[%s1 + $0x8] sm:$0xf]
    %v130 = vld [vmem:[%s1 + $0xc] sm:$0xf]
    %v131 = vld [vmem:[%s1 + $0x10] sm:$0xf]
    %v132 = vld [vmem:[%s1 + $0x14] sm:$0xf]
    %v133 = vld [vmem:[%s4] sm:$0xff]
    %v134 = vld [vmem:[%s4 + $0x8] sm:$0xff]
    %v141 = vcombine.low %v127, %v128
    %v142 = vcombine.low %v129, %v130
    %v143 = vcombine.low %v131, %v132
    %v144 = vsel %vm54, %v141, 0
    %v146 = vsel %vm54, %v142, 0
    %v148 = vsel %vm54, %v143, 0
    %150 = vmatprep.subr.mxu0 0.0
    %151 = vmatpush1.msra.mxu0 0.0
    %152 = vmatprep.subr.mxu0 0.0
    %153 = vmatpush1.msra.mxu0 0.0
    %154 = vmatprep.subr.mxu0 0.0
    %155 = vmatpush1.msra.mxu0 0.0
    %156 = vmatprep.subr.mxu0 0.0
    %157 = vmatpush1.msra.mxu0 0.0
    %158 = vmatprep.subr.mxu0 0.0
    %159 = vmatpush1.msra.mxu0 0.0
    %160 = vmatprep.subr.mxu0 0.0
    %161 = vmatpush1.msra.mxu0 0.0
    %162 = vmatprep.subr.mxu0 0.0
    %163 = vmatpush1.msra.mxu0 0.0
    %164 = vmatprep.subr.mxu0 0.0
    %165 = vmatpush1.msra.mxu0 0.0
    %166 = vmatprep.subr.mxu0 0.0
    %167 = vmatpush1.msra.mxu0 0.0
    %168 = vmatprep.subr.mxu0 0.0
    %169 = vmatpush1.msra.mxu0 0.0
    %170 = vmatprep.subr.mxu0 0.0
    %171 = vmatpush1.msra.mxu0 0.0
    %172 = vmatprep.subr.mxu0 0.0
    %173 = vmatpush1.msra.mxu0 0.0
    %174 = vmatprep.subr.mxu0 0.0
    %175 = vmatpush1.msra.mxu0 0.0
    %176 = vmatprep.subr.mxu0 0.0
    %177 = vmatpush1.msra.mxu0 0.0
    %178 = vmatprep.subr.mxu0 0.0
    %179 = vmatpush1.msra.mxu0 %v134
    %180 = vmatprep.subr.mxu0 0.0
    %181 = vmatpush1.msra.mxu0 %v133
    %182 = vmatprep.subr.mxu0 0.0
    %183 = vmatpush2.msra.mxu0 0.0
    %184 = vmatprep.subr.mxu0 0.0
    %185 = vmatpush2.msra.mxu0 0.0
    %186 = vmatprep.subr.mxu0 0.0
    %187 = vmatpush2.msra.mxu0 0.0
    %188 = vmatprep.subr.mxu0 0.0
    %189 = vmatpush2.msra.mxu0 0.0
    %190 = vmatprep.subr.mxu0 0.0
    %191 = vmatpush2.msra.mxu0 0.0
    %192 = vmatprep.subr.mxu0 0.0
    %193 = vmatpush2.msra.mxu0 0.0
    %194 = vmatprep.subr.mxu0 0.0
    %195 = vmatpush2.msra.mxu0 0.0
    %196 = vmatprep.subr.mxu0 0.0
    %197 = vmatpush2.msra.mxu0 0.0
    %198 = vmatprep.subr.mxu0 0.0
    %199 = vmatpush2.msra.mxu0 0.0
    %200 = vmatprep.subr.mxu0 0.0
    %201 = vmatpush2.msra.mxu0 0.0
    %202 = vmatprep.subr.mxu0 0.0
    %203 = vmatpush2.msra.mxu0 0.0
    %204 = vmatprep.subr.mxu0 0.0
    %205 = vmatpush2.msra.mxu0 0.0
    %206 = vmatprep.subr.mxu0 0.0
    %207 = vmatpush2.msra.mxu0 0.0
    %208 = vmatprep.subr.mxu0 0.0
    %209 = vmatpush2.msra.mxu0 0.0
    %210 = vmatprep.subr.mxu0 0.0
    %211 = vmatpush2.msra.mxu0 0.0
    %212 = vmatprep.subr.mxu0 0.0
    %213 = vmatpush2.msra.mxu0 0.0
    %214 = vmatprep.mubr.f32.mxu0 0.0
    %215 = vmatmul.mubr.f32.gmra.mxu0 %v144
    %v216 = vpop.f32.mrf.mxu0
    %v217 = vadd.f32 0.0, %v216
    %v218 = vpop.f32.mrf.mxu0
    %219 = vmatprep.mubr.f32.mxu0 0.0
    %220 = vmatmul.mubr.f32.gmra.mxu0 %v146
    %v221 = vpop.f32.mrf.mxu0
    %v222 = vadd.f32 0.0, %v221
    %v223 = vpop.f32.mrf.mxu0
    %224 = vmatprep.mubr.f32.mxu0 0.0
    %225 = vmatmul.mubr.f32.gmra.mxu0 %v148
    %v226 = vpop.f32.mrf.mxu0
    %v227 = vadd.f32 0.0, %v226
    %v228 = vpop.f32.mrf.mxu0
    %229 = vdwg.mxu0
    %v230 = vadd.f32 %v217, %v124
    %v231 = vadd.f32 %v222, %v124
    %v232 = vadd.f32 %v227, %v124
    %v233 = vld [vmem:[%s5] sm:$0x1]
    %v235 = vlaneseq
    %v236 = vshrl.u32 %v235, 7
    %v237 = vsub.s32 0, %v236
    %v238 = vrot.slane %v233, %v237
    %v240 = vadd.f32 %v230, %v238
    %v241 = vadd.f32 %v231, %v238
    %v242 = vadd.f32 %v232, %v238
    %v243 = vmax.f32 %v240, 0.0
    %v244 = vmax.f32 %v241, 0.0
    %v245 = vmax.f32 %v242, 0.0
    %v249 = vcombine.high %v243, %v243
    %v250 = vcombine.high %v244, %v244
    %v251 = vcombine.high %v245, %v245
    %vm255 = vcmask 257024
    %v256 = vsel %vm255, %v243, 0.0
    %v257 = vrot.slane %v256, 4
    %v258 = vadd.f32 %v256, %v257
    %v259 = vrot.slane %v258, 2
    %v260 = vadd.f32 %v258, %v259
    %v261 = vrot.slane %v260, 1
    %v262 = vadd.f32 %v260, %v261
    %v263 = vsel %vm255, %v249, 0.0
    %v264 = vrot.slane %v263, 4
    %v265 = vadd.f32 %v263, %v264
    %v266 = vrot.slane %v265, 2
    %v267 = vadd.f32 %v265, %v266
    %v268 = vrot.slane %v267, 1
    %v269 = vadd.f32 %v267, %v268
    %v270 = vsel %vm255, %v244, 0.0
    %v271 = vrot.slane %v270, 4
    %v272 = vadd.f32 %v270, %v271
    %v273 = vrot.slane %v272, 2
    %v274 = vadd.f32 %v272, %v273
    %v275 = vrot.slane %v274, 1
    %v276 = vadd.f32 %v274, %v275
    %v277 = vsel %vm255, %v250, 0.0
    %v278 = vrot.slane %v277, 4
    %v279 = vadd.f32 %v277, %v278
    %v280 = vrot.slane %v279, 2
    %v281 = vadd.f32 %v279, %v280
    %v282 = vrot.slane %v281, 1
    %v283 = vadd.f32 %v281, %v282
    %v284 = vsel %vm255, %v245, 0.0
    %v285 = vrot.slane %v284, 4
    %v286 = vadd.f32 %v284, %v285
    %v287 = vrot.slane %v286, 2
    %v288 = vadd.f32 %v286, %v287
    %v289 = vrot.slane %v288, 1
    %v290 = vadd.f32 %v288, %v289
    %v291 = vsel %vm255, %v251, 0.0
    %v292 = vrot.slane %v291, 4
    %v293 = vadd.f32 %v291, %v292
    %v294 = vrot.slane %v293, 2
    %v295 = vadd.f32 %v293, %v294
    %v296 = vrot.slane %v295, 1
    %v297 = vadd.f32 %v295, %v296
    %v298 = vrcp.pop 4.0
    %v299 = vmul.f32 %v262, %v298
    %v300 = vmul.f32 %v269, %v298
    %v301 = vmul.f32 %v276, %v298
    %v302 = vmul.f32 %v283, %v298
    %v303 = vmul.f32 %v290, %v298
    %v304 = vmul.f32 %v297, %v298
    %v305 = vld [vmem:[%s6] sm:$0xff]
    %v306 = vld [vmem:[%s6 + $0x8] sm:$0xff]
    %v307 = vld [vmem:[%s6 + $0x10] sm:$0xff]
    %v308 = vld [vmem:[%s6 + $0x18] sm:$0xff]
    %v309 = vld [vmem:[%s7] sm:$0x1]
    %v311 = vlaneseq
    %v312 = vshrl.u32 %v311, 7
    %v313 = vsub.s32 0, %v312
    %v314 = vrot.slane %v309, %v313
    %vm322 = vcmask 1041409
    %v323 = vsel %vm322, %v300, %v299
    %vm324 = vcmask 1042434
    %v325 = vsel %vm324, %v301, %v323
    %vm326 = vcmask 1043459
    %v327 = vsel %vm326, %v302, %v325
    %vm328 = vcmask 1044484
    %v329 = vsel %vm328, %v303, %v327
    %vm330 = vcmask 1045509
    %v331 = vsel %vm330, %v304, %v329
    %vm332 = vcmask 261120
    %v333 = vsel %vm332, %v331, 0
    %335 = vmatprep.subr.mxu0 0.0
    %336 = vmatpush1.msra.mxu0 0.0
    %337 = vmatprep.subr.mxu0 0.0
    %338 = vmatpush1.msra.mxu0 0.0
    %339 = vmatprep.subr.mxu0 0.0
    %340 = vmatpush1.msra.mxu0 0.0
    %341 = vmatprep.subr.mxu0 0.0
    %342 = vmatpush1.msra.mxu0 0.0
    %343 = vmatprep.subr.mxu0 0.0
    %344 = vmatpush1.msra.mxu0 0.0
    %345 = vmatprep.subr.mxu0 0.0
    %346 = vmatpush1.msra.mxu0 0.0
    %347 = vmatprep.subr.mxu0 0.0
    %348 = vmatpush1.msra.mxu0 0.0
    %349 = vmatprep.subr.mxu0 0.0
    %350 = vmatpush1.msra.mxu0 0.0
    %351 = vmatprep.subr.mxu0 0.0
    %352 = vmatpush1.msra.mxu0 0.0
    %353 = vmatprep.subr.mxu0 0.0
    %354 = vmatpush1.msra.mxu0 0.0
    %355 = vmatprep.subr.mxu0 0.0
    %356 = vmatpush1.msra.mxu0 0.0
    %357 = vmatprep.subr.mxu0 0.0
    %358 = vmatpush1.msra.mxu0 0.0
    %359 = vmatprep.subr.mxu0 0.0
    %360 = vmatpush1.msra.mxu0 %v308
    %361 = vmatprep.subr.mxu0 0.0
    %362 = vmatpush1.msra.mxu0 %v307
    %363 = vmatprep.subr.mxu0 0.0
    %364 = vmatpush1.msra.mxu0 %v306
    %365 = vmatprep.subr.mxu0 0.0
    %366 = vmatpush1.msra.mxu0 %v305
    %367 = vmatprep.subr.mxu0 0.0
    %368 = vmatpush2.msra.mxu0 0.0
    %369 = vmatprep.subr.mxu0 0.0
    %370 = vmatpush2.msra.mxu0 0.0
    %371 = vmatprep.subr.mxu0 0.0
    %372 = vmatpush2.msra.mxu0 0.0
    %373 = vmatprep.subr.mxu0 0.0
    %374 = vmatpush2.msra.mxu0 0.0
    %375 = vmatprep.subr.mxu0 0.0
    %376 = vmatpush2.msra.mxu0 0.0
    %377 = vmatprep.subr.mxu0 0.0
    %378 = vmatpush2.msra.mxu0 0.0
    %379 = vmatprep.subr.mxu0 0.0
    %380 = vmatpush2.msra.mxu0 0.0
    %381 = vmatprep.subr.mxu0 0.0
    %382 = vmatpush2.msra.mxu0 0.0
    %383 = vmatprep.subr.mxu0 0.0
    %384 = vmatpush2.msra.mxu0 0.0
    %385 = vmatprep.subr.mxu0 0.0
    %386 = vmatpush2.msra.mxu0 0.0
    %387 = vmatprep.subr.mxu0 0.0
    %388 = vmatpush2.msra.mxu0 0.0
    %389 = vmatprep.subr.mxu0 0.0
    %390 = vmatpush2.msra.mxu0 0.0
    %391 = vmatprep.subr.mxu0 0.0
    %392 = vmatpush2.msra.mxu0 0.0
    %393 = vmatprep.subr.mxu0 0.0
    %394 = vmatpush2.msra.mxu0 0.0
    %395 = vmatprep.subr.mxu0 0.0
    %396 = vmatpush2.msra.mxu0 0.0
    %397 = vmatprep.subr.mxu0 0.0
    %398 = vmatpush2.msra.mxu0 0.0
    %399 = vmatprep.mubr.f32.mxu0 0.0
    %400 = vmatmul.mubr.f32.gmra.mxu0 %v333
    %v401 = vpop.f32.mrf.mxu0
    %v402 = vadd.f32 %v314, %v401
    %v403 = vpop.f32.mrf.mxu0
    %404 = vdwg.mxu0
    %v406 = vcombine.high %v402, %v402
    %v408 = vunpack.c.l.s4 1983009808
    %v409 = vunpack.c.0.s8 %v408
    %v410 = vlaneseq
    %v411 = vshrl.u32 %v410, 7
    %v412 = vsub.s32 %v409, %v411
    %v413 = vrot.slane %v402, %v412
    %v415 = vunpack.c.l.s4 1983009808
    %v416 = vunpack.c.0.s8 %v415
    %v417 = vlaneseq
    %v418 = vshrl.u32 %v417, 7
    %v419 = vsub.s32 %v416, %v418
    %v420 = vrot.slane %v406, %v419
    %v421 = vcombine.high %v413, %v413
    %v425 = vld [vmem:[%s2] sm:$0x7]
    %v426 = vlaneseq
    %v427 = vshrl.u32 %v426, 7
    %v428 = vsub.s32 0, %v427
    %v429 = vrot.slane %v425, %v428
    %431 = vbcast.lane.b32.xlu0 %v429, 256
    %v432 = vpop.permute.xlu0 %431
    %v433 = vlaneseq
    %v434 = vshrl.u32 %v433, 7
    %v435 = vsub.s32 1, %v434
    %v436 = vrot.slane %v425, %v435
    %438 = vbcast.lane.b32.xlu0 %v436, 256
    %v439 = vpop.permute.xlu0 %438
    %v440 = vlaneseq
    %v441 = vshrl.u32 %v440, 7
    %v442 = vsub.s32 2, %v441
    %v443 = vrot.slane %v425, %v442
    %445 = vbcast.lane.b32.xlu0 %v443, 256
    %v446 = vpop.permute.xlu0 %445
    %v447 = vmul.f32 %v413, %v432
    %v448 = vmul.f32 %v421, %v439
    %v449 = vmul.f32 %v420, %v446
    %vm450 = vcmask 123904
    %451 = vst.msk [vmem:[#allocation5] sm:$0x3] %vm450, %v447
    %452 = vst.msk [vmem:[#allocation5 + $0x2] sm:$0x3] %vm450, %v448
    %453 = vst.msk [vmem:[#allocation5 + $0x4] sm:$0x3] %vm450, %v449
    %v454 = vsel %vm450, %v447, 0.0
    %v455 = vsel %vm450, %v448, 0.0
    %v456 = vadd.f32 %v454, %v455
    %v457 = vsel %vm450, %v449, 0.0
    %v458 = vadd.f32 %v456, %v457
    %459 = vst.msk [vmem:[#allocation6] sm:$0x3] %vm450, %v458
    // Predicated region
    $region38: #{tpu_custom_call.1} parent=1 // pred_check
      _
    $region39: #{tpu_custom_call.1} parent=1 // pred_check_branch
      %461 = sbr.rel (0) target = $region41
    $region40: #{tpu_custom_call.1} parent=1 // pred_region
      %s463 = ssub.s32 96, 96
      %464 = vsyncadd [#allocation4], %s463
      %s465 = sshll.u32 [#allocation5], 4
      %s466 = int_to_ptr.vmem [resolvable:$true] %s465
      %471 = dma.vmem_to_hbm [thread:$0]  %s466, 96, %s8, [#allocation4], 32, 32, 2
    $region41: #{tpu_custom_call.1} parent=1 // pred_fallthru
      _
    // Predicated region
    $region42: #{tpu_custom_call.1} parent=1 // pred_check
      _
    $region43: #{tpu_custom_call.1} parent=1 // pred_check_branch
      %473 = sbr.rel (0) target = $region45
    $region44: #{tpu_custom_call.1} parent=1 // pred_region
      %s475 = ssub.s32 32, 32
      %476 = vsyncadd [#allocation7], %s475
      %s478 = sshll.u32 [#allocation6], 4
      %s479 = int_to_ptr.vmem [resolvable:$true] %s478
      %481 = dma.vmem_to_hbm [thread:$0]  %s479, 32, %s9, [#allocation7]
    $region45: #{tpu_custom_call.1} parent=1 // pred_fallthru
      _
    // Predicated region
    $region46: #{tpu_custom_call.1} parent=1 // pred_check
      _
    $region47: #{tpu_custom_call.1} parent=1 // pred_check_branch
      %483 = sbr.rel (0) target = $region49
    $region48: #{tpu_custom_call.1} parent=1 // pred_region
      %484 = dma.done [#allocation4], 96
    $region49: #{tpu_custom_call.1} parent=1 // pred_fallthru
      _
    // Predicated region
    $region50: #{tpu_custom_call.1} parent=1 // pred_check
      _
    $region51: #{tpu_custom_call.1} parent=1 // pred_check_branch
      %486 = sbr.rel (0) target = $region53
    $region52: #{tpu_custom_call.1} parent=1 // pred_region
      %487 = dma.done [#allocation7], 32
    $region53: #{tpu_custom_call.1} parent=1 // pred_fallthru
      _
    %488 = vsyncpa [#allocation3], 1
    %489 = vsyncpa [#allocation4], 1
    %490 = vsyncpa [#allocation7], 1

</llo_original>
